<compile_context>
chip_gen: v7x
topology: tpu7x:2x2x1
jax: 0.10.0
libtpu: 0.0.40
codegen_flags: <defaults>
</compile_context>

<pallas_src>
import functools

import jax
import jax.numpy as jnp
from jax import lax
from jax.experimental import pallas as pl
from jax.experimental.pallas import tpu as pltpu


def _supcon_kernel(feat_ref, cont_ref, lrow_ref, lcol_ref, out_ref,
                   s_exp_ref, s_ml_ref, s_m_ref, *, tr, tc):
    i = pl.program_id(0)          # row-tile index (parallel)
    j = pl.program_id(1)          # column-tile index (sequential reduction)

    @pl.when(j == 0)
    def _init():
        s_exp_ref[...] = jnp.zeros_like(s_exp_ref)
        s_ml_ref[...] = jnp.zeros_like(s_ml_ref)
        s_m_ref[...] = jnp.zeros_like(s_m_ref)

    # bf16 tiles straight off HBM (pre-normalized; 1/T already folded into the
    # row stream) feed the MXU at its native rate; accumulate in f32.
    logits = lax.dot_general(
        feat_ref[...], cont_ref[...],
        dimension_numbers=(((1,), (1,)), ((), ())),
        preferred_element_type=jnp.float32)            # [TR, TC] f32
    exp_l = jnp.exp(logits)                            # EUP

    # Column labels: the full (1, B) row is already resident in VMEM (fetched
    # once for the whole kernel); slice this tile's window.  Positive-pair
    # mask is a pure broadcast compare (no in-kernel transpose, no float mask).
    if tc == lcol_ref.shape[1]:
        lcol = lcol_ref[...]                           # single column tile
    else:
        col_start = pl.multiple_of(j * tc, tc)         # lane-aligned (tc % 128 == 0)
        lcol = lcol_ref[:, pl.ds(col_start, tc)]       # [1, TC]
    eq = lrow_ref[...] == lcol                         # [TR, TC] bool

    # Only tiles whose row/col ranges intersect the global diagonal pay for
    # the self-contrast (eye) exclusion.  Correct for TR != TC.
    row0 = i * tr
    col0 = j * tc
    has_diag = jnp.logical_and(row0 < col0 + tc, col0 < row0 + tr)

    @pl.when(jnp.logical_not(has_diag))
    def _off_diag_tile():
        s_exp_ref[...] += jnp.sum(exp_l, axis=1, keepdims=True)
        s_ml_ref[...] += jnp.sum(jnp.where(eq, logits, 0.0), axis=1, keepdims=True)
        s_m_ref[...] += jnp.sum(jnp.where(eq, 1.0, 0.0), axis=1, keepdims=True)

    @pl.when(has_diag)
    def _diag_tile():
        r_glob = lax.broadcasted_iota(jnp.int32, logits.shape, 0) + row0
        c_glob = lax.broadcasted_iota(jnp.int32, logits.shape, 1) + col0
        off = r_glob != c_glob
        keep = jnp.logical_and(eq, off)
        s_exp_ref[...] += jnp.sum(jnp.where(off, exp_l, 0.0), axis=1, keepdims=True)
        s_ml_ref[...] += jnp.sum(jnp.where(keep, logits, 0.0), axis=1, keepdims=True)
        s_m_ref[...] += jnp.sum(jnp.where(keep, 1.0, 0.0), axis=1, keepdims=True)

    @pl.when(j == pl.num_programs(1) - 1)
    def _finalize():
        s_e = s_exp_ref[...]
        s_ml = s_ml_ref[...]
        s_m = s_m_ref[...]
        log_z = jnp.log(s_e + 1e-8)
        # mean log-prob over positives; exact reciprocal (EUP) to hold tolerance.
        out_ref[...] = (s_ml - s_m * log_z) * pl.reciprocal(s_m + 1e-8, approx=False)


_VMEM_BUDGET = 32 * 1024 * 1024     # tile-picking budget (headroom below the 48 MiB cap)


def _vmem_estimate(b, d, tr, tc):
    """Rough per-core VMEM footprint of one grid step (bytes)."""
    tiles = 2 * (tr * d * 2) + 2 * (tc * d * 2)      # double-buffered bf16 f / c tiles
    labels = 2 * (tr * 4) + b * 4                    # row-label blocks + full column row
    outs = 2 * (tr * 4)                              # double-buffered output block
    scratch = 3 * (tr * 4)                           # running-sum accumulators
    temps = 4 * (tr * tc * 4)                        # logits / exp / masked selects (f32)
    return tiles + labels + outs + scratch + temps


def _pick_tiles(b, d):
    # Row tile: bigger cuts contrast-HBM re-reads (traffic = (B/TR)*B*D bytes),
    # but keep at least 2 row tiles so v7x's two TensorCores both get work.
    tr = None
    for cand in (512, 256, 128):
        if b % cand == 0 and b // cand >= 2:
            tr = cand
            break
    if tr is None:
        for cand in (256, 128):
            if b % cand == 0:
                tr = cand
                break
    if tr is None:
        tr = b   # small / non-128-divisible batch: single full-extent block
        # TODO(synk): pad B to a multiple of 128 (sentinel label + mask) so tiny
        # or ragged batches don't fall back to an un-pipelined (1, 1) grid.

    # Column tile: the sequential reduction axis; as large as the VMEM budget
    # allows, to amortize the per-step grid overhead.
    cands = {c for c in (2048, 1024, 512, 256, 128) if b % c == 0}
    if b % 128 == 0:
        cands.add(b)
    tc = None
    for cand in sorted(cands, reverse=True):
        if _vmem_estimate(b, d, tr, cand) <= _VMEM_BUDGET:
            tc = cand
            break
    if tc is None:
        tc = 128 if b % 128 == 0 else b
    return tr, tc


def supcon_loss(features, contrast_features, labels, temperature=0.07,
                row_tile=None, col_tile=None):
    """features, contrast_features: [B, D]; labels: [B] int. Returns scalar f32."""
    b, d = features.shape
    inv_t = 1.0 / float(temperature)

    # Pre-normalize once (fused O(B*D) XLA pass), fold 1/T into the row stream,
    # hand the kernel bf16 operands.  All in-kernel math stays f32.
    f = features.astype(jnp.float32)
    c = contrast_features.astype(jnp.float32)
    f_scale = lax.rsqrt(jnp.maximum(jnp.sum(f * f, axis=-1, keepdims=True), 1e-24))
    c_scale = lax.rsqrt(jnp.maximum(jnp.sum(c * c, axis=-1, keepdims=True), 1e-24))
    f_bf16 = (f * (f_scale * inv_t)).astype(jnp.bfloat16)
    c_bf16 = (c * c_scale).astype(jnp.bfloat16)

    auto_tr, auto_tc = _pick_tiles(b, d)
    tr = row_tile if row_tile is not None else auto_tr
    tc = col_tile if col_tile is not None else auto_tc
    assert b % tr == 0 and b % tc == 0, (b, tr, tc)
    n_i, n_j = b // tr, b // tc

    labels_row = labels.astype(jnp.int32).reshape(b, 1)   # [B, 1]
    labels_col = labels.astype(jnp.int32).reshape(1, b)   # [1, B] (no in-kernel .T)

    grid_spec = pltpu.PrefetchScalarGridSpec(
        num_scalar_prefetch=0,
        grid=(n_i, n_j),
        in_specs=[
            pl.BlockSpec((tr, d), lambda i, j: (i, 0)),    # features row tile (bf16)
            pl.BlockSpec((tc, d), lambda i, j: (j, 0)),    # contrast col tile (bf16)
            pl.BlockSpec((tr, 1), lambda i, j: (i, 0)),    # labels (rows)
            pl.BlockSpec((1, b), lambda i, j: (0, 0)),     # labels (cols), fetched once
        ],
        out_specs=pl.BlockSpec((tr, 1), lambda i, j: (i, 0)),
        scratch_shapes=[pltpu.VMEM((tr, 1), jnp.float32)] * 3,
    )

    est = _vmem_estimate(b, d, tr, tc)
    vmem_limit = int(min(max(2 * est, 24 * 1024 * 1024), 48 * 1024 * 1024))

    mean_log_prob_pos = pl.pallas_call(
        functools.partial(_supcon_kernel, tr=tr, tc=tc),
        out_shape=jax.ShapeDtypeStruct((b, 1), jnp.float32),
        grid_spec=grid_spec,
        compiler_params=pltpu.CompilerParams(
            dimension_semantics=("parallel", "arbitrary"),
            vmem_limit_bytes=vmem_limit,
        ),
    )(f_bf16, c_bf16, labels_row, labels_col)

    # TODO(synk): lane-dense output layout (e.g. (B/TR, TR)) would avoid masked
    # (TR, 1) stores on v5e; low priority on v6e/v7x.
    return -jnp.mean(mean_log_prob_pos)


def _supcon_loss_ref(features, contrast_features, labels, temperature=0.07):
    """Pure-JAX f32 reference mirroring the PyTorch forward exactly."""
    f = features.astype(jnp.float32)
    c = contrast_features.astype(jnp.float32)
    f = f / jnp.maximum(jnp.linalg.norm(f, axis=-1, keepdims=True), 1e-12)
    c = c / jnp.maximum(jnp.linalg.norm(c, axis=-1, keepdims=True), 1e-12)
    b = f.shape[0]
    logits = (f @ c.T) / temperature
    mask = (labels[:, None] == labels[None, :]).astype(jnp.float32)
    logits_mask = jnp.ones((b, b), jnp.float32) - jnp.eye(b, dtype=jnp.float32)
    mask = mask * logits_mask
    exp_logits = jnp.exp(logits) * logits_mask
    log_prob = logits - jnp.log(exp_logits.sum(1, keepdims=True) + 1e-8)
    mean_log_prob_pos = (mask * log_prob).sum(1) / (mask.sum(1) + 1e-8)
    return -mean_log_prob_pos.mean()


def _supcon_loss_ref_bf16(features, contrast_features, labels, temperature=0.07):
    """Reference that mirrors the kernel's bf16 MXU feed (f32 accumulation)."""
    inv_t = 1.0 / float(temperature)
    f = features.astype(jnp.float32)
    c = contrast_features.astype(jnp.float32)
    f = f * (lax.rsqrt(jnp.maximum(jnp.sum(f * f, -1, keepdims=True), 1e-24)) * inv_t)
    c = c * lax.rsqrt(jnp.maximum(jnp.sum(c * c, -1, keepdims=True), 1e-24))
    f = f.astype(jnp.bfloat16).astype(jnp.float32)
    c = c.astype(jnp.bfloat16).astype(jnp.float32)
    b = f.shape[0]
    logits = f @ c.T
    mask = (labels[:, None] == labels[None, :]).astype(jnp.float32)
    logits_mask = jnp.ones((b, b), jnp.float32) - jnp.eye(b, dtype=jnp.float32)
    mask = mask * logits_mask
    exp_logits = jnp.exp(logits) * logits_mask
    log_prob = logits - jnp.log(exp_logits.sum(1, keepdims=True) + 1e-8)
    mean_log_prob_pos = (mask * log_prob).sum(1) / (mask.sum(1) + 1e-8)
    return -mean_log_prob_pos.mean()


if __name__ == "__main__":
    key = jax.random.PRNGKey(0)

    cases = [
        # (B, D, n_classes, row_tile, col_tile)
        (8, 32, 3, None, None),       # tiny: single full-extent block, (1,1) grid
        (512, 64, 10, None, None),    # auto tiles -> TR=256, TC=512, grid (2,1)
        (1024, 64, 10, 256, 512),     # forced TR!=TC, streaming reduction grid (4,2)
    ]

    for idx, (bb, dd, nc, rt, ct) in enumerate(cases):
        key, kf, kc, kl = jax.random.split(key, 4)
        feats = jax.random.normal(kf, (bb, dd), dtype=jnp.float32)
        cons = jax.random.normal(kc, (bb, dd), dtype=jnp.float32)
        labs = jax.random.randint(kl, (bb,), 0, nc, dtype=jnp.int32)

        loss = jax.block_until_ready(
            supcon_loss(feats, cons, labs, row_tile=rt, col_tile=ct))
        ref_bf = jax.block_until_ready(_supcon_loss_ref_bf16(feats, cons, labs))
        ref_f32 = jax.block_until_ready(_supcon_loss_ref(feats, cons, labs))

        assert jnp.isfinite(loss), (idx, loss)
        # Tight check against a reference that mirrors the bf16 MXU feed.
        assert jnp.allclose(loss, ref_bf, rtol=1e-3, atol=1e-3), (idx, loss, ref_bf)
        # Looser check against the exact-f32 PyTorch-equivalent reference.
        assert jnp.allclose(loss, ref_f32, rtol=3e-2, atol=3e-2), (idx, loss, ref_f32)

    print("KERNEL_OK")
</pallas_src>

<mosaic_0001>
module attributes {stable_mosaic.version = 11 : i64} {
  func.func @_supcon_kernel(%arg0: i32, %arg1: i32, %arg2: memref<8x32xbf16, #tpu.memory_space<vmem>>, %arg3: memref<8x32xbf16, #tpu.memory_space<vmem>>, %arg4: memref<8x1xi32, #tpu.memory_space<vmem>>, %arg5: memref<1x8xi32, #tpu.memory_space<vmem>>, %arg6: memref<8x1xf32, #tpu.memory_space<vmem>>, %arg7: memref<8x1xf32, #tpu.memory_space<vmem>>, %arg8: memref<8x1xf32, #tpu.memory_space<vmem>>, %arg9: memref<8x1xf32, #tpu.memory_space<vmem>>) attributes {dimension_semantics = [#tpu.dimension_semantics<parallel>, #tpu.dimension_semantics<arbitrary>], iteration_bounds = array<i64: 1, 1>, scalar_prefetch = 0 : i64, scratch_operands = 3 : i64, tpu.core_type = #tpu.core_type<tc>, window_params = [{transform_indices = @transform_0, window_bounds = array<i64: 8, 32>}, {transform_indices = @transform_1, window_bounds = array<i64: 8, 32>}, {transform_indices = @transform_2, window_bounds = array<i64: 8, 1>}, {pipeline_mode = #tpu.pipeline_mode<synchronous>, transform_indices = @transform_3, window_bounds = array<i64: 1, 8>}, {transform_indices = @transform_4, window_bounds = array<i64: 8, 1>}]} {
    %c0_i32 = arith.constant 0 : i32
    %0 = arith.cmpi eq, %arg1, %c0_i32 : i32
    %1 = arith.extui %0 : i1 to i32
    %c0_i32_0 = arith.constant 0 : i32
    %2 = arith.cmpi ne, %1, %c0_i32_0 : i32
    scf.if %2 {
      %cst_15 = arith.constant 0.000000e+00 : f32
      %27 = vector.broadcast %cst_15 : f32 to vector<8x1xf32>
      %c0_16 = arith.constant 0 : index
      %c0_17 = arith.constant 0 : index
      %28 = vector.load %arg7[%c0_16, %c0_17] : memref<8x1xf32, #tpu.memory_space<vmem>>, vector<8x1xf32>
      tpu.vector_store %arg7[%c0_16, %c0_17], %27 {strides = array<i32>} : memref<8x1xf32, #tpu.memory_space<vmem>>, vector<8x1xf32>,
      %cst_18 = arith.constant 0.000000e+00 : f32
      %29 = vector.broadcast %cst_18 : f32 to vector<8x1xf32>
      %c0_19 = arith.constant 0 : index
      %c0_20 = arith.constant 0 : index
      %30 = vector.load %arg8[%c0_19, %c0_20] : memref<8x1xf32, #tpu.memory_space<vmem>>, vector<8x1xf32>
      tpu.vector_store %arg8[%c0_19, %c0_20], %29 {strides = array<i32>} : memref<8x1xf32, #tpu.memory_space<vmem>>, vector<8x1xf32>,
      %cst_21 = arith.constant 0.000000e+00 : f32
      %31 = vector.broadcast %cst_21 : f32 to vector<8x1xf32>
      %c0_22 = arith.constant 0 : index
      %c0_23 = arith.constant 0 : index
      %32 = vector.load %arg9[%c0_22, %c0_23] : memref<8x1xf32, #tpu.memory_space<vmem>>, vector<8x1xf32>
      tpu.vector_store %arg9[%c0_22, %c0_23], %31 {strides = array<i32>} : memref<8x1xf32, #tpu.memory_space<vmem>>, vector<8x1xf32>,
    } else {
    }
    %c0 = arith.constant 0 : index
    %c0_1 = arith.constant 0 : index
    %3 = vector.load %arg2[%c0, %c0_1] : memref<8x32xbf16, #tpu.memory_space<vmem>>, vector<8x32xbf16>
    %c0_2 = arith.constant 0 : index
    %c0_3 = arith.constant 0 : index
    %4 = vector.load %arg3[%c0_2, %c0_3] : memref<8x32xbf16, #tpu.memory_space<vmem>>, vector<8x32xbf16>
    %cst = arith.constant dense<0.000000e+00> : vector<8x8xf32>
    %5 = tpu.matmul %3, %4, %cst {dimension_numbers = #tpu.dot_dimension_numbers<[1], [1], [0], [0], [0, 0, 1, 0], [], []>} : vector<8x32xbf16>, vector<8x32xbf16>, vector<8x8xf32> -> vector<8x8xf32>
    %6 = math.exp %5 : vector<8x8xf32>
    %c0_4 = arith.constant 0 : index
    %c0_5 = arith.constant 0 : index
    %7 = vector.load %arg5[%c0_4, %c0_5] : memref<1x8xi32, #tpu.memory_space<vmem>>, vector<1x8xi32>
    %c0_6 = arith.constant 0 : index
    %c0_7 = arith.constant 0 : index
    %8 = vector.load %arg4[%c0_6, %c0_7] : memref<8x1xi32, #tpu.memory_space<vmem>>, vector<8x1xi32>
    %9 = vector.broadcast %8 : vector<8x1xi32> to vector<8x8xi32>
    %10 = vector.broadcast %7 : vector<1x8xi32> to vector<8x8xi32>
    %11 = arith.cmpi eq, %9, %10 : vector<8x8xi32>
    %c8_i32 = arith.constant 8 : i32
    %12 = arith.muli %arg0, %c8_i32 : i32
    %c8_i32_8 = arith.constant 8 : i32
    %13 = arith.muli %arg1, %c8_i32_8 : i32
    %c8_i32_9 = arith.constant 8 : i32
    %14 = arith.addi %13, %c8_i32_9 : i32
    %15 = arith.cmpi slt, %12, %14 : i32
    %c8_i32_10 = arith.constant 8 : i32
    %16 = arith.addi %12, %c8_i32_10 : i32
    %17 = arith.cmpi slt, %13, %16 : i32
    %18 = arith.andi %15, %17 : i1
    %true = arith.constant true
    %19 = arith.xori %18, %true : i1
    %20 = arith.extui %19 : i1 to i32
    %c0_i32_11 = arith.constant 0 : i32
    %21 = arith.cmpi ne, %20, %c0_i32_11 : i32
    scf.if %21 {
      %c0_15 = arith.constant 0 : index
      %c0_16 = arith.constant 0 : index
      %27 = vector.load %arg7[%c0_15, %c0_16] : memref<8x1xf32, #tpu.memory_space<vmem>>, vector<8x1xf32>
      %cst_17 = arith.constant dense<0.000000e+00> : vector<8xf32>
      %28 = vector.multi_reduction <add>, %6, %cst_17 [1] : vector<8x8xf32> to vector<8xf32>
      %29 = vector.shape_cast %28 : vector<8xf32> to vector<8x1xf32>
      %30 = arith.addf %27, %29 : vector<8x1xf32>
      %c0_18 = arith.constant 0 : index
      %c0_19 = arith.constant 0 : index
      %31 = vector.load %arg7[%c0_18, %c0_19] : memref<8x1xf32, #tpu.memory_space<vmem>>, vector<8x1xf32>
      tpu.vector_store %arg7[%c0_18, %c0_19], %30 {strides = array<i32>} : memref<8x1xf32, #tpu.memory_space<vmem>>, vector<8x1xf32>,
      %c0_20 = arith.constant 0 : index
      %c0_21 = arith.constant 0 : index
      %32 = vector.load %arg8[%c0_20, %c0_21] : memref<8x1xf32, #tpu.memory_space<vmem>>, vector<8x1xf32>
      %cst_22 = arith.constant 0.000000e+00 : f32
      %33 = vector.broadcast %cst_22 : f32 to vector<8x8xf32>
      %34 = arith.select %11, %5, %33 : vector<8x8xi1>, vector<8x8xf32>
      %cst_23 = arith.constant dense<0.000000e+00> : vector<8xf32>
      %35 = vector.multi_reduction <add>, %34, %cst_23 [1] : vector<8x8xf32> to vector<8xf32>
      %36 = vector.shape_cast %35 : vector<8xf32> to vector<8x1xf32>
      %37 = arith.addf %32, %36 : vector<8x1xf32>
      %c0_24 = arith.constant 0 : index
      %c0_25 = arith.constant 0 : index
      %38 = vector.load %arg8[%c0_24, %c0_25] : memref<8x1xf32, #tpu.memory_space<vmem>>, vector<8x1xf32>
      tpu.vector_store %arg8[%c0_24, %c0_25], %37 {strides = array<i32>} : memref<8x1xf32, #tpu.memory_space<vmem>>, vector<8x1xf32>,
      %c0_26 = arith.constant 0 : index
      %c0_27 = arith.constant 0 : index
      %39 = vector.load %arg9[%c0_26, %c0_27] : memref<8x1xf32, #tpu.memory_space<vmem>>, vector<8x1xf32>
      %cst_28 = arith.constant 1.000000e+00 : f32
      %cst_29 = arith.constant 0.000000e+00 : f32
      %40 = vector.broadcast %cst_28 : f32 to vector<8x8xf32>
      %41 = vector.broadcast %cst_29 : f32 to vector<8x8xf32>
      %42 = arith.select %11, %40, %41 : vector<8x8xi1>, vector<8x8xf32>
      %cst_30 = arith.constant dense<0.000000e+00> : vector<8xf32>
      %43 = vector.multi_reduction <add>, %42, %cst_30 [1] : vector<8x8xf32> to vector<8xf32>
      %44 = vector.shape_cast %43 : vector<8xf32> to vector<8x1xf32>
      %45 = arith.addf %39, %44 : vector<8x1xf32>
      %c0_31 = arith.constant 0 : index
      %c0_32 = arith.constant 0 : index
      %46 = vector.load %arg9[%c0_31, %c0_32] : memref<8x1xf32, #tpu.memory_space<vmem>>, vector<8x1xf32>
      tpu.vector_store %arg9[%c0_31, %c0_32], %45 {strides = array<i32>} : memref<8x1xf32, #tpu.memory_space<vmem>>, vector<8x1xf32>,
    } else {
    }
    %22 = arith.extui %18 : i1 to i32
    %c0_i32_12 = arith.constant 0 : i32
    %23 = arith.cmpi ne, %22, %c0_i32_12 : i32
    scf.if %23 {
      %27 = tpu.iota {dimensions = array<i32: 0>} : vector<8x8xi32>
      %28 = vector.broadcast %12 : i32 to vector<8x8xi32>
      %29 = arith.addi %27, %28 : vector<8x8xi32>
      %30 = tpu.iota {dimensions = array<i32: 1>} : vector<8x8xi32>
      %31 = vector.broadcast %13 : i32 to vector<8x8xi32>
      %32 = arith.addi %30, %31 : vector<8x8xi32>
      %33 = arith.cmpi ne, %29, %32 : vector<8x8xi32>
      %34 = arith.andi %11, %33 : vector<8x8xi1>
      %c0_15 = arith.constant 0 : index
      %c0_16 = arith.constant 0 : index
      %35 = vector.load %arg7[%c0_15, %c0_16] : memref<8x1xf32, #tpu.memory_space<vmem>>, vector<8x1xf32>
      %cst_17 = arith.constant 0.000000e+00 : f32
      %36 = vector.broadcast %cst_17 : f32 to vector<8x8xf32>
      %37 = arith.select %33, %6, %36 : vector<8x8xi1>, vector<8x8xf32>
      %cst_18 = arith.constant dense<0.000000e+00> : vector<8xf32>
      %38 = vector.multi_reduction <add>, %37, %cst_18 [1] : vector<8x8xf32> to vector<8xf32>
      %39 = vector.shape_cast %38 : vector<8xf32> to vector<8x1xf32>
      %40 = arith.addf %35, %39 : vector<8x1xf32>
      %c0_19 = arith.constant 0 : index
      %c0_20 = arith.constant 0 : index
      %41 = vector.load %arg7[%c0_19, %c0_20] : memref<8x1xf32, #tpu.memory_space<vmem>>, vector<8x1xf32>
      tpu.vector_store %arg7[%c0_19, %c0_20], %40 {strides = array<i32>} : memref<8x1xf32, #tpu.memory_space<vmem>>, vector<8x1xf32>,
      %c0_21 = arith.constant 0 : index
      %c0_22 = arith.constant 0 : index
      %42 = vector.load %arg8[%c0_21, %c0_22] : memref<8x1xf32, #tpu.memory_space<vmem>>, vector<8x1xf32>
      %cst_23 = arith.constant 0.000000e+00 : f32
      %43 = vector.broadcast %cst_23 : f32 to vector<8x8xf32>
      %44 = arith.select %34, %5, %43 : vector<8x8xi1>, vector<8x8xf32>
      %cst_24 = arith.constant dense<0.000000e+00> : vector<8xf32>
      %45 = vector.multi_reduction <add>, %44, %cst_24 [1] : vector<8x8xf32> to vector<8xf32>
      %46 = vector.shape_cast %45 : vector<8xf32> to vector<8x1xf32>
      %47 = arith.addf %42, %46 : vector<8x1xf32>
      %c0_25 = arith.constant 0 : index
      %c0_26 = arith.constant 0 : index
      %48 = vector.load %arg8[%c0_25, %c0_26] : memref<8x1xf32, #tpu.memory_space<vmem>>, vector<8x1xf32>
      tpu.vector_store %arg8[%c0_25, %c0_26], %47 {strides = array<i32>} : memref<8x1xf32, #tpu.memory_space<vmem>>, vector<8x1xf32>,
      %c0_27 = arith.constant 0 : index
      %c0_28 = arith.constant 0 : index
      %49 = vector.load %arg9[%c0_27, %c0_28] : memref<8x1xf32, #tpu.memory_space<vmem>>, vector<8x1xf32>
      %cst_29 = arith.constant 1.000000e+00 : f32
      %cst_30 = arith.constant 0.000000e+00 : f32
      %50 = vector.broadcast %cst_29 : f32 to vector<8x8xf32>
      %51 = vector.broadcast %cst_30 : f32 to vector<8x8xf32>
      %52 = arith.select %34, %50, %51 : vector<8x8xi1>, vector<8x8xf32>
      %cst_31 = arith.constant dense<0.000000e+00> : vector<8xf32>
      %53 = vector.multi_reduction <add>, %52, %cst_31 [1] : vector<8x8xf32> to vector<8xf32>
      %54 = vector.shape_cast %53 : vector<8xf32> to vector<8x1xf32>
      %55 = arith.addf %49, %54 : vector<8x1xf32>
      %c0_32 = arith.constant 0 : index
      %c0_33 = arith.constant 0 : index
      %56 = vector.load %arg9[%c0_32, %c0_33] : memref<8x1xf32, #tpu.memory_space<vmem>>, vector<8x1xf32>
      tpu.vector_store %arg9[%c0_32, %c0_33], %55 {strides = array<i32>} : memref<8x1xf32, #tpu.memory_space<vmem>>, vector<8x1xf32>,
    } else {
    }
    %c0_i32_13 = arith.constant 0 : i32
    %24 = arith.cmpi eq, %arg1, %c0_i32_13 : i32
    %25 = arith.extui %24 : i1 to i32
    %c0_i32_14 = arith.constant 0 : i32
    %26 = arith.cmpi ne, %25, %c0_i32_14 : i32
    scf.if %26 {
      %c0_15 = arith.constant 0 : index
      %c0_16 = arith.constant 0 : index
      %27 = vector.load %arg7[%c0_15, %c0_16] : memref<8x1xf32, #tpu.memory_space<vmem>>, vector<8x1xf32>
      %c0_17 = arith.constant 0 : index
      %c0_18 = arith.constant 0 : index
      %28 = vector.load %arg8[%c0_17, %c0_18] : memref<8x1xf32, #tpu.memory_space<vmem>>, vector<8x1xf32>
      %c0_19 = arith.constant 0 : index
      %c0_20 = arith.constant 0 : index
      %29 = vector.load %arg9[%c0_19, %c0_20] : memref<8x1xf32, #tpu.memory_space<vmem>>, vector<8x1xf32>
      %cst_21 = arith.constant 9.99999993E-9 : f32
      %30 = vector.broadcast %cst_21 : f32 to vector<8x1xf32>
      %31 = arith.addf %27, %30 : vector<8x1xf32>
      %32 = math.log %31 : vector<8x1xf32>
      %33 = arith.mulf %29, %32 : vector<8x1xf32>
      %34 = arith.subf %28, %33 : vector<8x1xf32>
      %cst_22 = arith.constant 9.99999993E-9 : f32
      %35 = vector.broadcast %cst_22 : f32 to vector<8x1xf32>
      %36 = arith.addf %29, %35 : vector<8x1xf32>
      %37 = tpu.reciprocal %36 : vector<8x1xf32> -> vector<8x1xf32>
      %38 = arith.mulf %34, %37 : vector<8x1xf32>
      %c0_23 = arith.constant 0 : index
      %c0_24 = arith.constant 0 : index
      %39 = vector.load %arg6[%c0_23, %c0_24] : memref<8x1xf32, #tpu.memory_space<vmem>>, vector<8x1xf32>
      tpu.vector_store %arg6[%c0_23, %c0_24], %38 {strides = array<i32>} : memref<8x1xf32, #tpu.memory_space<vmem>>, vector<8x1xf32>,
    } else {
    }
    return
  }
  func.func @transform_0(%arg0: i32, %arg1: i32) -> (i32, i32) {
    %c0_i32 = arith.constant 0 : i32
    %c0_i32_0 = arith.constant 0 : i32
    return %arg0, %c0_i32 : i32, i32
  }
  func.func @transform_1(%arg0: i32, %arg1: i32) -> (i32, i32) {
    %c0_i32 = arith.constant 0 : i32
    %c0_i32_0 = arith.constant 0 : i32
    return %arg1, %c0_i32 : i32, i32
  }
  func.func @transform_2(%arg0: i32, %arg1: i32) -> (i32, i32) {
    %c0_i32 = arith.constant 0 : i32
    %c0_i32_0 = arith.constant 0 : i32
    return %arg0, %c0_i32 : i32, i32
  }
  func.func @transform_3(%arg0: i32, %arg1: i32) -> (i32, i32) {
    %c0_i32 = arith.constant 0 : i32
    %c0_i32_0 = arith.constant 0 : i32
    %c0_i32_1 = arith.constant 0 : i32
    return %c0_i32, %c0_i32_0 : i32, i32
  }
  func.func @transform_4(%arg0: i32, %arg1: i32) -> (i32, i32) {
    %c0_i32 = arith.constant 0 : i32
    %c0_i32_0 = arith.constant 0 : i32
    return %arg0, %c0_i32 : i32, i32
  }
}

</mosaic_0001>

<llo_original>
// kernel: tpu_custom_call.1
$region0: #{tpu_custom_call.1}
  #allocation0 [shape = 'u32[]', space=smem, size = 0x4, offset = 0x4, fixed_abs, tag = 'smem constant byte address 0x4 - core index']
  #allocation1 [shape = 'u32[144,128]{1,0:T(1,128)}', space=vmem, size = 0x12000, scoped, tag = 'internal scratch']
  #allocation2 [shape = 'f32[8,1]{1,0:T(8,128)}', space=vmem, size = 0x1000, scoped, tag = 'scratch operand']
  #allocation3 [shape = 'f32[8,1]{1,0:T(8,128)}', space=vmem, size = 0x1000, scoped, tag = 'scratch operand']
  #allocation4 [shape = 'f32[8,1]{1,0:T(8,128)}', space=vmem, size = 0x1000, scoped, tag = 'scratch operand']
  %s0 = inlined_call_operand.vmem [shape: bf16[8,32], index: 0, kind: input, shape index: {}]
  %s1 = inlined_call_operand.vmem [shape: bf16[8,32], index: 1, kind: input, shape index: {}]
  %s2 = inlined_call_operand.vmem [shape: s32[8,1], index: 2, kind: input, shape index: {}]
  %s3 = inlined_call_operand.vmem [shape: s32[1,8], index: 3, kind: input, shape index: {}]
  %s4 = inlined_call_operand.vmem [shape: f32[8,1], index: 4, kind: output, shape index: {}]
  %s5 = sld [smem:[#allocation0]]
  $region42: #{tpu_custom_call.1} parent=0
    _
  %s7 = ssub.s32 1, %s5
  %s8 = scalar_select 0, %s7, %s5
  // Predicated region
  $region2: #{tpu_custom_call.1} parent=0 // pred_check
    _
  $region3: #{tpu_custom_call.1} parent=0 // pred_check_branch
    %10 = sbr.rel (0) target = $region5
  $region4: #{tpu_custom_call.1} parent=0 // pred_region
    _
  $region5: #{tpu_custom_call.1} parent=0 // pred_fallthru
    _
  // Predicated region
  $region6: #{tpu_custom_call.1} parent=0 // pred_check
    _
  $region7: #{tpu_custom_call.1} parent=0 // pred_check_branch
    %12 = sbr.rel (0) target = $region9
  $region8: #{tpu_custom_call.1} parent=0 // pred_region
    _
  $region9: #{tpu_custom_call.1} parent=0 // pred_fallthru
    _
  // Predicated region
  $region10: #{tpu_custom_call.1} parent=0 // pred_check
    _
  $region11: #{tpu_custom_call.1} parent=0 // pred_check_branch
    %14 = sbr.rel (0) target = $region13
  $region12: #{tpu_custom_call.1} parent=0 // pred_region
    _
  $region13: #{tpu_custom_call.1} parent=0 // pred_fallthru
    _
  // Predicated region
  $region14: #{tpu_custom_call.1} parent=0 // pred_check
    _
  $region15: #{tpu_custom_call.1} parent=0 // pred_check_branch
    %16 = sbr.rel (0) target = $region17
  $region16: #{tpu_custom_call.1} parent=0 // pred_region
    _
  $region17: #{tpu_custom_call.1} parent=0 // pred_fallthru
    _
  %p18 = scmp.eq.s32.totalorder 0, 0
  // Predicated region
  $region18: #{tpu_custom_call.1} parent=0 // pred_check
    %p19 = pneg %p18
  $region19: #{tpu_custom_call.1} parent=0 // pred_check_branch
    %21 = sbr.rel (%p19) target = $region21
  $region20: #{tpu_custom_call.1} parent=0 // pred_region
    %vm22 = vcmask 7168
    %23 = vst.msk [vmem:[#allocation2] sm:$0xff] %vm22, 0.0
    %24 = vst.msk [vmem:[#allocation3] sm:$0xff] %vm22, 0.0
    %25 = vst.msk [vmem:[#allocation4] sm:$0xff] %vm22, 0.0
  $region21: #{tpu_custom_call.1} parent=0 // pred_fallthru
    _
  %v26 = vld [vmem:[%s0] sm:$0xf]
  %v27 = vld [vmem:[%s1] sm:$0xf]
  %vm28 = vcmask 261120
  %v30 = vsel %vm28, %v26, 0
  %v33 = vsel %vm28, %v27, 0
  %35 = vmatprep.subr.bf16.mxu0 0
  %36 = vmatpush1.bf16.xpose.msra.mxu0 %v33
  %37 = vmatprep.subr.bf16.mxu0 0
  %38 = vmatpush1.bf16.xpose.msra.mxu0 0
  %39 = vmatprep.subr.bf16.mxu0 0
  %40 = vmatpush1.bf16.xpose.msra.mxu0 0
  %41 = vmatprep.subr.bf16.mxu0 0
  %42 = vmatpush1.bf16.xpose.msra.mxu0 0
  %43 = vmatprep.subr.bf16.mxu0 0
  %44 = vmatpush1.bf16.xpose.msra.mxu0 0
  %45 = vmatprep.subr.bf16.mxu0 0
  %46 = vmatpush1.bf16.xpose.msra.mxu0 0
  %47 = vmatprep.subr.bf16.mxu0 0
  %48 = vmatpush1.bf16.xpose.msra.mxu0 0
  %49 = vmatprep.subr.bf16.mxu0 0
  %50 = vmatpush1.bf16.xpose.msra.mxu0 0
  %51 = vmatprep.subr.bf16.mxu0 0
  %52 = vmatpush1.bf16.xpose.msra.mxu0 0
  %53 = vmatprep.subr.bf16.mxu0 0
  %54 = vmatpush1.bf16.xpose.msra.mxu0 0
  %55 = vmatprep.subr.bf16.mxu0 0
  %56 = vmatpush1.bf16.xpose.msra.mxu0 0
  %57 = vmatprep.subr.bf16.mxu0 0
  %58 = vmatpush1.bf16.xpose.msra.mxu0 0
  %59 = vmatprep.subr.bf16.mxu0 0
  %60 = vmatpush1.bf16.xpose.msra.mxu0 0
  %61 = vmatprep.subr.bf16.mxu0 0
  %62 = vmatpush1.bf16.xpose.msra.mxu0 0
  %63 = vmatprep.subr.bf16.mxu0 0
  %64 = vmatpush1.bf16.xpose.msra.mxu0 0
  %65 = vmatprep.subr.bf16.mxu0 0
  %66 = vmatpush1.bf16.xpose.msra.mxu0 0
  %67 = vmatprep.mubr.bf16.mxu0 0
  %68 = vmatmul.mubr.bf16.gmra.mrb[0].mxu0 %v30
  %v69 = vpop.f32.mrb[0].mxu0
  %v70 = vadd.f32 0.0, %v69
  %v71 = vpop.f32.mrb[0].mxu0
  %v72 = vpop.f32.mrb[0].mxu0
  %v73 = vpop.f32.mrb[0].mxu0
  %74 = vdwg.mxu0
  %v75 = vmul.f32 %v70, 1.442695
  %v76 = vpow.pop %v75
  %v77 = vld [vmem:[%s3] sm:$0x1]
  %v78 = vld [vmem:[%s2] sm:$0xff]
  %79 = vset.pattern.permute.xlu0 0
  %80 = vperm.xlu0 %79, %v78
  %v81 = vpop.permute.xlu0 %80
  %v82 = vlaneseq
  %v83 = vshrl.u32 %v82, 7
  %v84 = vsub.s32 0, %v83
  %v85 = vrot.slane %v77, %v84
  %vm86 = vcmp.eq.s32.totalorder %v81, %v85
  %s87 = smul.u32 0, 8
  %s88 = smul.u32 0, 8
  %s89 = sadd.s32 %s88, 8
  %p90 = scmp.lt.s32.totalorder %s87, %s89
  %s91 = sadd.s32 %s87, 8
  %p92 = scmp.lt.s32.totalorder %s88, %s91
  %p93 = pnand %p90, %p92
  %p94 = pneg %p93
  // Predicated region
  $region22: #{tpu_custom_call.1} parent=0 // pred_check
    _
  $region23: #{tpu_custom_call.1} parent=0 // pred_check_branch
    %96 = sbr.rel (%p93) target = $region25
  $region24: #{tpu_custom_call.1} parent=0 // pred_region
    %v97 = vlaneseq
    %v98 = vshrl.u32 %v97, 7
    %v99 = vstv %s87
    %v100 = vadd.s32 %v98, %v99
    %v101 = vlaneseq
    %v102 = vand.u32 %v101, 127
    %v103 = vstv %s88
    %v104 = vadd.s32 %v102, %v103
    %vm105 = vcmp.ne.s32.totalorder %v100, %v104
    %vm106 = vmand %vm86, %vm105
    %v107 = vld [vmem:[#allocation2] sm:$0xff]
    %v108 = vsel %vm105, %v76, 0.0
    %vm109 = vcmask 64512
    %v110 = vsel %vm109, %v108, 0.0
    %111 = vadd.xlane.f32.xlu0 %v110
    %v112 = vpop.xlane.xlu0 %111
    %v113 = vadd.f32 %v107, %v112
    %vm114 = vcmask 7168
    %115 = vst.msk [vmem:[#allocation2] sm:$0xff] %vm114, %v113
    %v116 = vld [vmem:[#allocation3] sm:$0xff]
    %v117 = vsel %vm106, %v70, 0.0
    %v118 = vsel %vm109, %v117, 0.0
    %119 = vadd.xlane.f32.xlu0 %v118
    %v120 = vpop.xlane.xlu0 %119
    %v121 = vadd.f32 %v116, %v120
    %122 = vst.msk [vmem:[#allocation3] sm:$0xff] %vm114, %v121
    %v123 = vld [vmem:[#allocation4] sm:$0xff]
    %v124 = vsel %vm106, 1.0, 0.0
    %v125 = vsel %vm109, %v124, 0.0
    %126 = vadd.xlane.f32.xlu0 %v125
    %v127 = vpop.xlane.xlu0 %126
    %v128 = vadd.f32 %v123, %v127
    %129 = vst.msk [vmem:[#allocation4] sm:$0xff] %vm114, %v128
  $region25: #{tpu_custom_call.1} parent=0 // pred_fallthru
    _
  // Predicated region
  $region26: #{tpu_custom_call.1} parent=0 // pred_check
    %p130 = pneg %p93
  $region27: #{tpu_custom_call.1} parent=0 // pred_check_branch
    %132 = sbr.rel (%p130) target = $region29
  $region28: #{tpu_custom_call.1} parent=0 // pred_region
    %v133 = vld [vmem:[#allocation2] sm:$0xff]
    %vm134 = vcmask 64512
    %v135 = vsel %vm134, %v76, 0.0
    %136 = vadd.xlane.f32.xlu0 %v135
    %v137 = vpop.xlane.xlu0 %136
    %v138 = vadd.f32 %v133, %v137
    %vm139 = vcmask 7168
    %140 = vst.msk [vmem:[#allocation2] sm:$0xff] %vm139, %v138
    %v141 = vld [vmem:[#allocation3] sm:$0xff]
    %v142 = vsel %vm86, %v70, 0.0
    %v143 = vsel %vm134, %v142, 0.0
    %144 = vadd.xlane.f32.xlu0 %v143
    %v145 = vpop.xlane.xlu0 %144
    %v146 = vadd.f32 %v141, %v145
    %147 = vst.msk [vmem:[#allocation3] sm:$0xff] %vm139, %v146
    %v148 = vld [vmem:[#allocation4] sm:$0xff]
    %v149 = vsel %vm86, 1.0, 0.0
    %v150 = vsel %vm134, %v149, 0.0
    %151 = vadd.xlane.f32.xlu0 %v150
    %v152 = vpop.xlane.xlu0 %151
    %v153 = vadd.f32 %v148, %v152
    %154 = vst.msk [vmem:[#allocation4] sm:$0xff] %vm139, %v153
  $region29: #{tpu_custom_call.1} parent=0 // pred_fallthru
    _
  // Predicated region
  $region30: #{tpu_custom_call.1} parent=0 // pred_check
    %p155 = pneg %p18
  $region31: #{tpu_custom_call.1} parent=0 // pred_check_branch
    %157 = sbr.rel (%p155) target = $region33
  $region32: #{tpu_custom_call.1} parent=0 // pred_region
    %v158 = vld [vmem:[#allocation2] sm:$0xff]
    %v159 = vld [vmem:[#allocation3] sm:$0xff]
    %v160 = vld [vmem:[#allocation4] sm:$0xff]
    %v161 = vadd.f32 %v158, 1e-08
    %v162 = vlog2.pop %v161
    %v163 = vmul.f32 %v162, 0.6931472
    %v164 = vmul.f32 %v160, %v163
    %v165 = vsub.f32 %v159, %v164
    %v166 = vadd.f32 %v160, 1e-08
    %v167 = vrcp.pop %v166
    %v168 = vmul.f32 %v165, %v167
    %vm169 = vcmask 7168
    %170 = vst.msk [vmem:[%s4] sm:$0xff] %vm169, %v168
  $region33: #{tpu_custom_call.1} parent=0 // pred_fallthru
    _
  // Predicated region
  $region34: #{tpu_custom_call.1} parent=0 // pred_check
    _
  $region35: #{tpu_custom_call.1} parent=0 // pred_check_branch
    %172 = sbr.rel (0) target = $region37
  $region36: #{tpu_custom_call.1} parent=0 // pred_region
    _
  $region37: #{tpu_custom_call.1} parent=0 // pred_fallthru
    _
  // Predicated region
  $region38: #{tpu_custom_call.1} parent=0 // pred_check
    _
  $region39: #{tpu_custom_call.1} parent=0 // pred_check_branch
    %174 = sbr.rel (0) target = $region41
  $region40: #{tpu_custom_call.1} parent=0 // pred_region
    _
  $region41: #{tpu_custom_call.1} parent=0 // pred_fallthru
    _

</llo_original>
